<compile_context>
chip_gen: v7x
topology: tpu7x:2x2x1
jax: 0.10.0
libtpu: 0.0.40
codegen_flags: <defaults>
</compile_context>

<pallas_src>
import functools

import jax
import jax.numpy as jnp
from jax.experimental import pallas as pl
from jax.experimental.pallas import tpu as pltpu

ALPHA = 0.001        # hard-coded in the torch forward
LEAKY_SLOPE = 0.1    # nn.LeakyReLU(0.1)
CONCAT = True        # module flag: apply ELU at the end


# ----------------------------------------------------------------------------
# Stage 1: node-local math.  Per row tile:
#   support = x @ W                       (MXU)
#   [l_D, r_D] = sigmoid(leaky(support @ [a1|a2]))   (one fused MXU matmul)
# ----------------------------------------------------------------------------
def _prep_kernel(x_ref, w_ref, a12_ref, sup_ref, d_ref):
    support = jnp.dot(x_ref[...], w_ref[...],
                      preferred_element_type=jnp.float32)          # (tm, F_out)
    da = jnp.dot(support, a12_ref[...],
                 preferred_element_type=jnp.float32)                # (tm, 2)
    da = jnp.where(da > 0.0, da, LEAKY_SLOPE * da)                  # LeakyReLU(0.1)
    d_ref[...] = jax.nn.sigmoid(da)                                 # [:,0]=l_D [:,1]=r_D
    sup_ref[...] = support.astype(sup_ref.dtype)


# ----------------------------------------------------------------------------
# Stage 2: one wide matmul over the adjacency row tile.
#   P = adj_tile @ [ r_D*support | support | r_D | 1 | pad ]
#   num = l_D * P[:, :F]        + alpha * P[:, F:2F]
#   den = l_D * P[:, 2F:2F+1]   + alpha * P[:, 2F+1:2F+2]
#   out = elu(num / den)
# ----------------------------------------------------------------------------
def _prop_kernel(adj_ref, rhs_ref, ld_ref, out_ref, *, f_out):
    # adj arrives as bf16 (exact for 0/1 adjacency); cast up so the matmul and
    # all elementwise math accumulate in f32.
    adj = adj_ref[...].astype(jnp.float32)                          # (tm, N)
    p = jnp.dot(adj, rhs_ref[...],
                preferred_element_type=jnp.float32)                 # (tm, Kp)
    l_d = ld_ref[...]                                               # (tm, 1)

    num = l_d * p[:, :f_out] + ALPHA * p[:, f_out:2 * f_out]
    den = (l_d * p[:, 2 * f_out:2 * f_out + 1]
           + ALPHA * p[:, 2 * f_out + 1:2 * f_out + 2])

    # NOTE: like the torch module, no zero-guard on `den` — isolated nodes
    # (all-zero adj row with no self loop) divide by zero in both.
    # pl.reciprocal(..., approx=True) would offload to the EUP slot if the
    # accuracy budget allows; exact here to match the f32 reference tightly.
    out = num * pl.reciprocal(den, approx=False)

    if CONCAT:  # F.elu
        out = jnp.where(out > 0.0, out, jnp.exp(out) - 1.0)

    out_ref[...] = out.astype(out_ref.dtype)


def dgraph_convolution(x, adj, w, a1, a2, *, row_tile=128, cast_adj_bf16=True):
    """Forward pass of DGraphConvolution.

    x   : (N, F_in) float32     adj : (N, N) dense adjacency
    w   : (F_in, F_out)         a1, a2 : (F_out, 1)
    returns (N, F_out) float32

    cast_adj_bf16: halves HBM->VMEM traffic for the dominant N x N operand;
    exact when the adjacency is 0/1.  Set False for weighted adjacencies that
    need full f32 precision.
    """
    n, f_in = x.shape
    f_out = w.shape[1]
    k = 2 * f_out + 2
    kp = ((k + 127) // 128) * 128          # lane-dense (multiple of 128) RHS width
    tm = n if n <= row_tile else row_tile  # row tile (full array or mult. of 8)
    grid = (pl.cdiv(n, tm),)

    a12 = jnp.concatenate([a1, a2], axis=1)            # (F_out, 2)

    # ---- stage 1: support + fused attention scalars --------------------------
    support, d = pl.pallas_call(
        _prep_kernel,
        out_shape=(jax.ShapeDtypeStruct((n, f_out), jnp.float32),
                   jax.ShapeDtypeStruct((n, 2), jnp.float32)),
        grid_spec=pltpu.PrefetchScalarGridSpec(
            num_scalar_prefetch=0,
            grid=grid,
            in_specs=[pl.BlockSpec((tm, f_in), lambda i: (i, 0)),
                      pl.BlockSpec((f_in, f_out), lambda i: (0, 0)),
                      pl.BlockSpec((f_out, 2), lambda i: (0, 0))],
            out_specs=(pl.BlockSpec((tm, f_out), lambda i: (i, 0)),
                       pl.BlockSpec((tm, 2), lambda i: (i, 0)))),
        compiler_params=pltpu.CompilerParams(
            dimension_semantics=("parallel",)),
    )(x, w, a12)

    # ---- layout plumbing (XLA): lane-dense fused RHS slab ---------------------
    l_d = d[:, 0:1]
    r_d = d[:, 1:2]
    pieces = [r_d * support, support, r_d, jnp.ones((n, 1), jnp.float32)]
    if kp > k:
        pieces.append(jnp.zeros((n, kp - k), jnp.float32))
    rhs = jnp.concatenate(pieces, axis=1)              # (N, Kp)

    adj_in = adj.astype(jnp.bfloat16) if cast_adj_bf16 else adj

    # ---- stage 2: single fused pass over adj, row-tiled & pipelined -----------
    out = pl.pallas_call(
        functools.partial(_prop_kernel, f_out=f_out),
        out_shape=jax.ShapeDtypeStruct((n, f_out), jnp.float32),
        grid_spec=pltpu.PrefetchScalarGridSpec(
            num_scalar_prefetch=0,
            grid=grid,
            in_specs=[pl.BlockSpec((tm, n), lambda i: (i, 0)),   # adj row tile
                      pl.BlockSpec((n, kp), lambda i: (0, 0)),   # RHS resident
                      pl.BlockSpec((tm, 1), lambda i: (i, 0))],  # l_D row tile
            out_specs=pl.BlockSpec((tm, f_out), lambda i: (i, 0))),
        compiler_params=pltpu.CompilerParams(
            dimension_semantics=("parallel",)),   # megacore sharding on v7x
    )(adj_in, rhs, l_d)
    return out


# ----------------------------------------------------------------------------
# pure-JAX reference of the torch forward + self test
# ----------------------------------------------------------------------------
def _xavier_uniform(key, shape, gain):
    fan_in, fan_out = shape
    a = gain * jnp.sqrt(6.0 / (fan_in + fan_out))
    return jax.random.uniform(key, shape, jnp.float32, minval=-a, maxval=a)


def _reference(x, adj, w, a1, a2):
    support = x @ w
    leaky = lambda z: jnp.where(z > 0, z, LEAKY_SLOPE * z)
    l_d = jax.nn.sigmoid(leaky(support @ a1))
    r_d = jax.nn.sigmoid(leaky(support @ a2))
    num = l_d * (adj @ (r_d * support)) + ALPHA * (adj @ support)
    den = l_d * (adj @ r_d) + ALPHA * jnp.sum(adj, axis=-1, keepdims=True)
    out = num / den
    return jnp.where(out > 0, out, jnp.exp(out) - 1.0)


if __name__ == "__main__":
    N, F_IN, F_OUT = 256, 64, 32

    key = jax.random.PRNGKey(0)
    k_x, k_adj, k_w, k_a1, k_a2 = jax.random.split(key, 5)

    x = jax.random.normal(k_x, (N, F_IN), jnp.float32)
    # dense 0/1 adjacency + self loops (keeps the normalizer strictly positive,
    # same requirement the torch module implicitly has).
    adj = (jax.random.uniform(k_adj, (N, N)) > 0.7).astype(jnp.float32)
    adj = jnp.maximum(adj, jnp.eye(N, dtype=jnp.float32))

    gain = 1.414
    w = _xavier_uniform(k_w, (F_IN, F_OUT), gain)
    a1 = _xavier_uniform(k_a1, (F_OUT, 1), gain)
    a2 = _xavier_uniform(k_a2, (F_OUT, 1), gain)

    out = jax.block_until_ready(dgraph_convolution(x, adj, w, a1, a2))

    ref = _reference(x, adj, w, a1, a2)
    assert out.shape == (N, F_OUT)
    err = float(jnp.max(jnp.abs(out - ref)))
    assert jnp.allclose(out, ref, atol=1e-4, rtol=1e-4), f"max |err| = {err}"

    print("KERNEL_OK")
</pallas_src>

<mosaic_0001>
module attributes {stable_mosaic.version = 11 : i64} {
  func.func @_prep_kernel(%arg0: i32, %arg1: memref<128x64xf32, #tpu.memory_space<vmem>>, %arg2: memref<64x32xf32, #tpu.memory_space<vmem>>, %arg3: memref<32x2xf32, #tpu.memory_space<vmem>>, %arg4: memref<128x32xf32, #tpu.memory_space<vmem>>, %arg5: memref<128x2xf32, #tpu.memory_space<vmem>>) attributes {dimension_semantics = [#tpu.dimension_semantics<parallel>], iteration_bounds = array<i64: 2>, scalar_prefetch = 0 : i64, scratch_operands = 0 : i64, tpu.core_type = #tpu.core_type<tc>, window_params = [{transform_indices = @transform_0, window_bounds = array<i64: 128, 64>}, {pipeline_mode = #tpu.pipeline_mode<synchronous>, transform_indices = @transform_1, window_bounds = array<i64: 64, 32>}, {pipeline_mode = #tpu.pipeline_mode<synchronous>, transform_indices = @transform_2, window_bounds = array<i64: 32, 2>}, {transform_indices = @transform_3, window_bounds = array<i64: 128, 32>}, {transform_indices = @transform_4, window_bounds = array<i64: 128, 2>}]} {
    %c0 = arith.constant 0 : index
    %c0_0 = arith.constant 0 : index
    %0 = vector.load %arg1[%c0, %c0_0] : memref<128x64xf32, #tpu.memory_space<vmem>>, vector<128x64xf32>
    %c0_1 = arith.constant 0 : index
    %c0_2 = arith.constant 0 : index
    %1 = vector.load %arg2[%c0_1, %c0_2] : memref<64x32xf32, #tpu.memory_space<vmem>>, vector<64x32xf32>
    %cst = arith.constant dense<0.000000e+00> : vector<128x32xf32>
    %2 = tpu.matmul %0, %1, %cst {dimension_numbers = #tpu.dot_dimension_numbers<[1], [0], [0], [1], [0, 0, 1, 1], [], []>} : vector<128x64xf32>, vector<64x32xf32>, vector<128x32xf32> -> vector<128x32xf32>
    %c0_3 = arith.constant 0 : index
    %c0_4 = arith.constant 0 : index
    %3 = vector.load %arg3[%c0_3, %c0_4] : memref<32x2xf32, #tpu.memory_space<vmem>>, vector<32x2xf32>
    %cst_5 = arith.constant dense<0.000000e+00> : vector<128x2xf32>
    %4 = tpu.matmul %2, %3, %cst_5 {dimension_numbers = #tpu.dot_dimension_numbers<[1], [0], [0], [1], [0, 0, 1, 1], [], []>} : vector<128x32xf32>, vector<32x2xf32>, vector<128x2xf32> -> vector<128x2xf32>
    %cst_6 = arith.constant 0.000000e+00 : f32
    %5 = vector.broadcast %cst_6 : f32 to vector<128x2xf32>
    %6 = arith.cmpf ogt, %4, %5 : vector<128x2xf32>
    %cst_7 = arith.constant 1.000000e-01 : f32
    %7 = vector.broadcast %cst_7 : f32 to vector<128x2xf32>
    %8 = arith.mulf %7, %4 : vector<128x2xf32>
    %9 = arith.select %6, %4, %8 : vector<128x2xi1>, vector<128x2xf32>
    %10 = arith.negf %9 : vector<128x2xf32>
    %11 = math.exp %10 : vector<128x2xf32>
    %cst_8 = arith.constant 1.000000e+00 : f32
    %12 = vector.broadcast %cst_8 : f32 to vector<128x2xf32>
    %13 = arith.addf %12, %11 : vector<128x2xf32>
    %14 = arith.divf %12, %13 : vector<128x2xf32>
    %c0_9 = arith.constant 0 : index
    %c0_10 = arith.constant 0 : index
    %15 = vector.load %arg5[%c0_9, %c0_10] : memref<128x2xf32, #tpu.memory_space<vmem>>, vector<128x2xf32>
    tpu.vector_store %arg5[%c0_9, %c0_10], %14 {strides = array<i32>} : memref<128x2xf32, #tpu.memory_space<vmem>>, vector<128x2xf32>,
    %c0_11 = arith.constant 0 : index
    %c0_12 = arith.constant 0 : index
    %16 = vector.load %arg4[%c0_11, %c0_12] : memref<128x32xf32, #tpu.memory_space<vmem>>, vector<128x32xf32>
    tpu.vector_store %arg4[%c0_11, %c0_12], %2 {strides = array<i32>} : memref<128x32xf32, #tpu.memory_space<vmem>>, vector<128x32xf32>,
    return
  }
  func.func @transform_0(%arg0: i32) -> (i32, i32) {
    %c0_i32 = arith.constant 0 : i32
    %c0_i32_0 = arith.constant 0 : i32
    return %arg0, %c0_i32 : i32, i32
  }
  func.func @transform_1(%arg0: i32) -> (i32, i32) {
    %c0_i32 = arith.constant 0 : i32
    %c0_i32_0 = arith.constant 0 : i32
    %c0_i32_1 = arith.constant 0 : i32
    return %c0_i32, %c0_i32_0 : i32, i32
  }
  func.func @transform_2(%arg0: i32) -> (i32, i32) {
    %c0_i32 = arith.constant 0 : i32
    %c0_i32_0 = arith.constant 0 : i32
    %c0_i32_1 = arith.constant 0 : i32
    return %c0_i32, %c0_i32_0 : i32, i32
  }
  func.func @transform_3(%arg0: i32) -> (i32, i32) {
    %c0_i32 = arith.constant 0 : i32
    %c0_i32_0 = arith.constant 0 : i32
    return %arg0, %c0_i32 : i32, i32
  }
  func.func @transform_4(%arg0: i32) -> (i32, i32) {
    %c0_i32 = arith.constant 0 : i32
    %c0_i32_0 = arith.constant 0 : i32
    return %arg0, %c0_i32 : i32, i32
  }
}

</mosaic_0001>

<llo_original>
// kernel: tpu_custom_call.1
$region0: #{tpu_custom_call.1}
  #allocation0 [shape = 'u32[]', space=smem, size = 0x4, offset = 0x4, fixed_abs, tag = 'smem constant byte address 0x4 - core index']
  #allocation1 [shape = 'u32[144,128]{1,0:T(1,128)}', space=vmem, size = 0x12000, scoped, tag = 'internal scratch']
  %s0 = inlined_call_operand.vmem [shape: f32[256,64], index: 0, kind: input, shape index: {}]
  %s1 = inlined_call_operand.vmem [shape: f32[64,32], index: 1, kind: input, shape index: {}]
  %s2 = inlined_call_operand.vmem [shape: f32[32,2], index: 2, kind: input, shape index: {}]
  %s3 = inlined_call_operand.vmem [shape: f32[256,32], index: 3, kind: output, shape index: {0}]
  %s4 = inlined_call_operand.vmem [shape: f32[256,2], index: 4, kind: output, shape index: {1}]
  %5 = xla_tuple %s3, %s4
  %s6 = sld [smem:[#allocation0]]
  $region53: #{tpu_custom_call.1} parent=0
    _
  %s8 = ssub.s32 1, %s6
  %s9 = scalar_select 0, %s8, %s6
  loop: start=0, step=1, limit=4
  $region2: #{tpu_custom_call.1} parent=0 // loop_pre_header
    _
  $region3: #{tpu_custom_call.1} parent=0 // loop_header
    %s11 = sphi 0, %s15
    %p12 = scmp.ge.s32.totalorder %s11, 4
    %s21 = sphi 0, %s23
    %s24 = sphi 0, %s21
    %s25 = sphi 0, %s24
    %s41 = sphi 0, %s25
    %s45 = sphi 0, %s45
    %s47 = sphi 0, %s45
    %s48 = sphi 0, %s47
    %s62 = sphi 0, %s48
    %s66 = sphi 0, %s66
    %s68 = sphi 0, %s66
    %s69 = sphi 0, %s68
    %s83 = sphi 0, %s69
    %s89 = sphi 0, %s91
    %s92 = sphi 0, %s89
    %s93 = sphi 0, %s92
    %s109 = sphi 0, %s93
    %s115 = sphi 0, %s117
    %s118 = sphi 0, %s115
    %s119 = sphi 0, %s118
    %s135 = sphi 0, %s119
  $region4: #{tpu_custom_call.1} parent=0 // loop_header_branch
    %14 = sbr.rel (%p12) target = $region8
  $region5: #{tpu_custom_call.1} parent=0 // loop_body
    %s16 = ssub.s32 %s11, 1
    %s17 = ssub.s32 %s11, 2
    %s18 = sadd.s32 %s11, 1
    %s19 = ssub.s32 %s11, %s18
    %p20 = scmp.eq.s32.totalorder %s19, 0
    %s22 = sadd.s32 %s21, 1
    %s23 = scalar_select %p20, %s21, %s22
    %p26 = pneg %p20
    %p27 = scmp.eq.s32.totalorder %s11, 1
    %p28 = por %p26, %p27
    %p29 = scmp.ne.s32.totalorder %s21, %s24
    %p30 = scmp.eq.s32.totalorder %s11, 0
    %p31 = por %p29, %p30
    %p32 = scmp.ne.s32.totalorder %s21, %s24
    %p33 = scmp.eq.s32.totalorder %s16, 1
    %p34 = por %p32, %p33
    %p35 = scmp.ne.s32.totalorder %s24, %s25
    %p36 = scmp.eq.s32.totalorder %s16, 0
    %p37 = por %p35, %p36
    %p38 = scmp.ne.s32.totalorder %s24, %s25
    %p39 = scmp.eq.s32.totalorder %s17, 1
    %p40 = por %p38, %p39
    %p42 = scmp.ne.s32.totalorder %s25, %s41
    %p43 = scmp.eq.s32.totalorder %s17, 0
    %p44 = por %p42, %p43
    %s46 = sadd.s32 %s45, 1
    %p49 = scmp.eq.s32.totalorder %s11, 1
    %p50 = scmp.ne.s32.totalorder %s45, %s47
    %p51 = scmp.eq.s32.totalorder %s11, 0
    %p52 = por %p50, %p51
    %p53 = scmp.ne.s32.totalorder %s45, %s47
    %p54 = scmp.eq.s32.totalorder %s16, 1
    %p55 = por %p53, %p54
    %p56 = scmp.ne.s32.totalorder %s47, %s48
    %p57 = scmp.eq.s32.totalorder %s16, 0
    %p58 = por %p56, %p57
    %p59 = scmp.ne.s32.totalorder %s47, %s48
    %p60 = scmp.eq.s32.totalorder %s17, 1
    %p61 = por %p59, %p60
    %p63 = scmp.ne.s32.totalorder %s48, %s62
    %p64 = scmp.eq.s32.totalorder %s17, 0
    %p65 = por %p63, %p64
    %s67 = sadd.s32 %s66, 1
    %p70 = scmp.eq.s32.totalorder %s11, 1
    %p71 = scmp.ne.s32.totalorder %s66, %s68
    %p72 = scmp.eq.s32.totalorder %s11, 0
    %p73 = por %p71, %p72
    %p74 = scmp.ne.s32.totalorder %s66, %s68
    %p75 = scmp.eq.s32.totalorder %s16, 1
    %p76 = por %p74, %p75
    %p77 = scmp.ne.s32.totalorder %s68, %s69
    %p78 = scmp.eq.s32.totalorder %s16, 0
    %p79 = por %p77, %p78
    %p80 = scmp.ne.s32.totalorder %s68, %s69
    %p81 = scmp.eq.s32.totalorder %s17, 1
    %p82 = por %p80, %p81
    %p84 = scmp.ne.s32.totalorder %s69, %s83
    %p85 = scmp.eq.s32.totalorder %s17, 0
    %p86 = por %p84, %p85
    %s87 = ssub.s32 %s11, %s18
    %p88 = scmp.eq.s32.totalorder %s87, 0
    %s90 = sadd.s32 %s89, 1
    %s91 = scalar_select %p88, %s89, %s90
    %p94 = pneg %p88
    %p95 = scmp.eq.s32.totalorder %s11, 1
    %p96 = por %p94, %p95
    %p97 = scmp.ne.s32.totalorder %s89, %s92
    %p98 = scmp.eq.s32.totalorder %s11, 0
    %p99 = por %p97, %p98
    %p100 = scmp.ne.s32.totalorder %s89, %s92
    %p101 = scmp.eq.s32.totalorder %s16, 1
    %p102 = por %p100, %p101
    %p103 = scmp.ne.s32.totalorder %s92, %s93
    %p104 = scmp.eq.s32.totalorder %s16, 0
    %p105 = por %p103, %p104
    %p106 = scmp.ne.s32.totalorder %s92, %s93
    %p107 = scmp.eq.s32.totalorder %s17, 1
    %p108 = por %p106, %p107
    %p110 = scmp.ne.s32.totalorder %s93, %s109
    %p111 = scmp.eq.s32.totalorder %s17, 0
    %p112 = por %p110, %p111
    %s113 = ssub.s32 %s11, %s18
    %p114 = scmp.eq.s32.totalorder %s113, 0
    %s116 = sadd.s32 %s115, 1
    %s117 = scalar_select %p114, %s115, %s116
    %p120 = pneg %p114
    %p121 = scmp.eq.s32.totalorder %s11, 1
    %p122 = por %p120, %p121
    %p123 = scmp.ne.s32.totalorder %s115, %s118
    %p124 = scmp.eq.s32.totalorder %s11, 0
    %p125 = por %p123, %p124
    %p126 = scmp.ne.s32.totalorder %s115, %s118
    %p127 = scmp.eq.s32.totalorder %s16, 1
    %p128 = por %p126, %p127
    %p129 = scmp.ne.s32.totalorder %s118, %s119
    %p130 = scmp.eq.s32.totalorder %s16, 0
    %p131 = por %p129, %p130
    %p132 = scmp.ne.s32.totalorder %s118, %s119
    %p133 = scmp.eq.s32.totalorder %s17, 1
    %p134 = por %p132, %p133
    %p136 = scmp.ne.s32.totalorder %s119, %s135
    %p137 = scmp.eq.s32.totalorder %s17, 0
    %p138 = por %p136, %p137
    %p139 = scmp.le.s32.totalorder 1, %s11
    %p140 = scmp.lt.s32.totalorder %s11, 3
    %p141 = pnand %p139, %p140
    %p142 = pneg %p141
    // Predicated region
    $region9: #{tpu_custom_call.1} parent=5 // pred_check
      _
    $region10: #{tpu_custom_call.1} parent=5 // pred_check_branch
      %144 = sbr.rel (%p141) target = $region12
    $region11: #{tpu_custom_call.1} parent=5 // pred_region
      %s145 = ssub.s32 %s11, 1
      // Predicated region
      $region13: #{tpu_custom_call.1} parent=11 // pred_check
        %p146 = pneg %p58
      $region14: #{tpu_custom_call.1} parent=11 // pred_check_branch
        %148 = sbr.rel (%p146) target = $region16
      $region15: #{tpu_custom_call.1} parent=11 // pred_region
        _
      $region16: #{tpu_custom_call.1} parent=11 // pred_fallthru
        _
      // Predicated region
      $region17: #{tpu_custom_call.1} parent=11 // pred_check
        %p149 = pneg %p79
      $region18: #{tpu_custom_call.1} parent=11 // pred_check_branch
        %151 = sbr.rel (%p149) target = $region20
      $region19: #{tpu_custom_call.1} parent=11 // pred_region
        _
      $region20: #{tpu_custom_call.1} parent=11 // pred_fallthru
        _
    $region12: #{tpu_custom_call.1} parent=5 // pred_fallthru
      _
    %p152 = scmp.lt.s32.totalorder %s11, 2
    // Predicated region
    $region21: #{tpu_custom_call.1} parent=5 // pred_check
      %p153 = pneg %p152
    $region22: #{tpu_custom_call.1} parent=5 // pred_check_branch
      %155 = sbr.rel (%p153) target = $region24
    $region23: #{tpu_custom_call.1} parent=5 // pred_region
      // Predicated region
      $region25: #{tpu_custom_call.1} parent=23 // pred_check
        %p156 = pneg %p31
      $region26: #{tpu_custom_call.1} parent=23 // pred_check_branch
        %158 = sbr.rel (%p156) target = $region28
      $region27: #{tpu_custom_call.1} parent=23 // pred_region
        %s159 = smul.u32 16, %s11
        %p160 = scmp.lt.s32.totalorder %s159, 31
        %s161 = scalar_select %p160, %s159, 31
        %s162 = smul.addr %s161, 8
        %s163 = scalar_lea.vmem %s0, %s162
        %s164 = smul.u32 16, %s11
      $region28: #{tpu_custom_call.1} parent=23 // pred_fallthru
        _
    $region24: #{tpu_custom_call.1} parent=5 // pred_fallthru
      _
    %p165 = scmp.le.s32.totalorder 1, %s11
    %p166 = scmp.lt.s32.totalorder %s11, 3
    %p167 = pnand %p165, %p166
    %p168 = pneg %p167
    // Predicated region
    $region29: #{tpu_custom_call.1} parent=5 // pred_check
      _
    $region30: #{tpu_custom_call.1} parent=5 // pred_check_branch
      %170 = sbr.rel (%p167) target = $region32
    $region31: #{tpu_custom_call.1} parent=5 // pred_region
      %s171 = ssub.s32 %s11, 1
      %s172 = smul.u32 16, %s16
      %p173 = scmp.lt.s32.totalorder %s172, 31
      %s174 = scalar_select %p173, %s172, 31
      %s175 = smul.addr %s174, 8
      %s176 = scalar_lea.vmem %s0, %s175
      %p177 = pneg %p37
      %p178 = pneg %p34
      %p179 = pneg %p58
      %p180 = pneg %p55
      %p181 = pneg %p79
      %p182 = pneg %p76
      %p183 = pneg %p105
      %p184 = pneg %p102
      %s185 = smul.u32 16, %s16
      %p186 = scmp.lt.s32.totalorder %s185, 31
      %s187 = scalar_select %p186, %s185, 31
      %s188 = smul.addr %s187, 8
      %s189 = scalar_lea.vmem %s3, %s188
      %p190 = pneg %p131
      %p191 = pneg %p128
      %s192 = smul.u32 16, %s16
      %p193 = scmp.lt.s32.totalorder %s192, 31
      %s194 = scalar_select %p193, %s192, 31
      %s195 = smul.addr %s194, 8
      %s196 = scalar_lea.vmem %s4, %s195
      %s197 = smul.u32 16, %s16
      %p198 = scmp.lt.s32.totalorder %s197, 31
      %s199 = scalar_select %p198, %s197, 31
      %s200 = smul.addr %s199, 8
      %s201 = scalar_lea.vmem %s0, %s200
      %s202 = smul.u32 16, %s16
      %s203 = smul.u32 16, %s16
      %p204 = scmp.lt.s32.totalorder %s203, 31
      %s205 = scalar_select %p204, %s203, 31
      %s206 = smul.addr %s205, 8
      %s207 = scalar_lea.vmem %s3, %s206
      %s208 = smul.u32 16, %s16
      %s209 = smul.u32 16, %s16
      %p210 = scmp.lt.s32.totalorder %s209, 31
      %s211 = scalar_select %p210, %s209, 31
      %s212 = smul.addr %s211, 8
      %s213 = scalar_lea.vmem %s4, %s212
      %s214 = smul.u32 16, %s16
      %v215 = vld [vmem:[%s201] sm:$0xff]
      %v216 = vld [vmem:[%s201 + $0x8] sm:$0xff]
      %v217 = vld [vmem:[%s201 + $0x10] sm:$0xff]
      %v218 = vld [vmem:[%s201 + $0x18] sm:$0xff]
      %v219 = vld [vmem:[%s201 + $0x20] sm:$0xff]
      %v220 = vld [vmem:[%s201 + $0x28] sm:$0xff]
      %v221 = vld [vmem:[%s201 + $0x30] sm:$0xff]
      %v222 = vld [vmem:[%s201 + $0x38] sm:$0xff]
      %v223 = vld [vmem:[%s201 + $0x40] sm:$0xff]
      %v224 = vld [vmem:[%s201 + $0x48] sm:$0xff]
      %v225 = vld [vmem:[%s201 + $0x50] sm:$0xff]
      %v226 = vld [vmem:[%s201 + $0x58] sm:$0xff]
      %v227 = vld [vmem:[%s201 + $0x60] sm:$0xff]
      %v228 = vld [vmem:[%s201 + $0x68] sm:$0xff]
      %v229 = vld [vmem:[%s201 + $0x70] sm:$0xff]
      %v230 = vld [vmem:[%s201 + $0x78] sm:$0xff]
      %v231 = vld [vmem:[%s1] sm:$0xff]
      %v232 = vld [vmem:[%s1 + $0x8] sm:$0xff]
      %v233 = vld [vmem:[%s1 + $0x10] sm:$0xff]
      %v234 = vld [vmem:[%s1 + $0x18] sm:$0xff]
      %v235 = vld [vmem:[%s1 + $0x20] sm:$0xff]
      %v236 = vld [vmem:[%s1 + $0x28] sm:$0xff]
      %v237 = vld [vmem:[%s1 + $0x30] sm:$0xff]
      %v238 = vld [vmem:[%s1 + $0x38] sm:$0xff]
      %vm239 = vcmask 523264
      %v241 = vsel %vm239, %v215, 0
      %v244 = vsel %vm239, %v216, 0
      %v247 = vsel %vm239, %v217, 0
      %v250 = vsel %vm239, %v218, 0
      %v253 = vsel %vm239, %v219, 0
      %v256 = vsel %vm239, %v220, 0
      %v259 = vsel %vm239, %v221, 0
      %v262 = vsel %vm239, %v222, 0
      %v265 = vsel %vm239, %v223, 0
      %v268 = vsel %vm239, %v224, 0
      %v271 = vsel %vm239, %v225, 0
      %v274 = vsel %vm239, %v226, 0
      %v277 = vsel %vm239, %v227, 0
      %v280 = vsel %vm239, %v228, 0
      %v283 = vsel %vm239, %v229, 0
      %v286 = vsel %vm239, %v230, 0
      %288 = vmatprep.subr.mxu0 0.0
      %289 = vmatpush1.msra.mxu0 %v231
      %290 = vmatprep.subr.mxu0 0.0
      %291 = vmatpush1.msra.mxu0 %v232
      %292 = vmatprep.subr.mxu0 0.0
      %293 = vmatpush1.msra.mxu0 %v233
      %294 = vmatprep.subr.mxu0 0.0
      %295 = vmatpush1.msra.mxu0 %v234
      %296 = vmatprep.subr.mxu0 0.0
      %297 = vmatpush1.msra.mxu0 %v235
      %298 = vmatprep.subr.mxu0 0.0
      %299 = vmatpush1.msra.mxu0 %v236
      %300 = vmatprep.subr.mxu0 0.0
      %301 = vmatpush1.msra.mxu0 %v237
      %302 = vmatprep.subr.mxu0 0.0
      %303 = vmatpush1.msra.mxu0 %v238
      %304 = vmatprep.subr.mxu0 0.0
      %305 = vmatpush1.msra.mxu0 0.0
      %306 = vmatprep.subr.mxu0 0.0
      %307 = vmatpush1.msra.mxu0 0.0
      %308 = vmatprep.subr.mxu0 0.0
      %309 = vmatpush1.msra.mxu0 0.0
      %310 = vmatprep.subr.mxu0 0.0
      %311 = vmatpush1.msra.mxu0 0.0
      %312 = vmatprep.subr.mxu0 0.0
      %313 = vmatpush1.msra.mxu0 0.0
      %314 = vmatprep.subr.mxu0 0.0
      %315 = vmatpush1.msra.mxu0 0.0
      %316 = vmatprep.subr.mxu0 0.0
      %317 = vmatpush1.msra.mxu0 0.0
      %318 = vmatprep.subr.mxu0 0.0
      %319 = vmatpush1.msra.mxu0 0.0
      %320 = vmatprep.subr.mxu0 0.0
      %321 = vmatpush1.msra.mxu0 0.0
      %322 = vmatprep.subr.mxu0 0.0
      %323 = vmatpush1.msra.mxu0 0.0
      %324 = vmatprep.subr.mxu0 0.0
      %325 = vmatpush1.msra.mxu0 0.0
      %326 = vmatprep.subr.mxu0 0.0
      %327 = vmatpush1.msra.mxu0 0.0
      %328 = vmatprep.subr.mxu0 0.0
      %329 = vmatpush1.msra.mxu0 0.0
      %330 = vmatprep.subr.mxu0 0.0
      %331 = vmatpush1.msra.mxu0 0.0
      %332 = vmatprep.subr.mxu0 0.0
      %333 = vmatpush1.msra.mxu0 0.0
      %334 = vmatprep.subr.mxu0 0.0
      %335 = vmatpush1.msra.mxu0 0.0
      %336 = vmatprep.subr.mxu0 0.0
      %337 = vmatpush1.msra.mxu0 0.0
      %338 = vmatprep.subr.mxu0 0.0
      %339 = vmatpush1.msra.mxu0 0.0
      %340 = vmatprep.subr.mxu0 0.0
      %341 = vmatpush1.msra.mxu0 0.0
      %342 = vmatprep.subr.mxu0 0.0
      %343 = vmatpush1.msra.mxu0 0.0
      %344 = vmatprep.subr.mxu0 0.0
      %345 = vmatpush1.msra.mxu0 0.0
      %346 = vmatprep.subr.mxu0 0.0
      %347 = vmatpush1.msra.mxu0 0.0
      %348 = vmatprep.subr.mxu0 0.0
      %349 = vmatpush1.msra.mxu0 0.0
      %350 = vmatprep.subr.mxu0 0.0
      %351 = vmatpush1.msra.mxu0 0.0
      %352 = vmatprep.mubr.f32.mxu0 0.0
      %353 = vmatmul.mubr.f32.gmra.mrb[0].mxu0 %v241
      %v354 = vpop.f32.mrb[0].mxu0
      %v355 = vadd.f32 0.0, %v354
      %v356 = vpop.f32.mrb[0].mxu0
      %357 = vmatprep.mubr.f32.mxu0 0.0
      %358 = vmatmul.mubr.f32.gmra.mrb[0].mxu0 %v244
      %v359 = vpop.f32.mrb[0].mxu0
      %v360 = vadd.f32 0.0, %v359
      %v361 = vpop.f32.mrb[0].mxu0
      %362 = vmatprep.mubr.f32.mxu0 0.0
      %363 = vmatmul.mubr.f32.gmra.mrb[0].mxu0 %v247
      %v364 = vpop.f32.mrb[0].mxu0
      %v365 = vadd.f32 0.0, %v364
      %v366 = vpop.f32.mrb[0].mxu0
      %367 = vmatprep.mubr.f32.mxu0 0.0
      %368 = vmatmul.mubr.f32.gmra.mrb[0].mxu0 %v250
      %v369 = vpop.f32.mrb[0].mxu0
      %v370 = vadd.f32 0.0, %v369
      %v371 = vpop.f32.mrb[0].mxu0
      %372 = vmatprep.mubr.f32.mxu0 0.0
      %373 = vmatmul.mubr.f32.gmra.mrb[0].mxu0 %v253
      %v374 = vpop.f32.mrb[0].mxu0
      %v375 = vadd.f32 0.0, %v374
      %v376 = vpop.f32.mrb[0].mxu0
      %377 = vmatprep.mubr.f32.mxu0 0.0
      %378 = vmatmul.mubr.f32.gmra.mrb[0].mxu0 %v256
      %v379 = vpop.f32.mrb[0].mxu0
      %v380 = vadd.f32 0.0, %v379
      %v381 = vpop.f32.mrb[0].mxu0
      %382 = vmatprep.mubr.f32.mxu0 0.0
      %383 = vmatmul.mubr.f32.gmra.mrb[0].mxu0 %v259
      %v384 = vpop.f32.mrb[0].mxu0
      %v385 = vadd.f32 0.0, %v384
      %v386 = vpop.f32.mrb[0].mxu0
      %387 = vmatprep.mubr.f32.mxu0 0.0
      %388 = vmatmul.mubr.f32.gmra.mrb[0].mxu0 %v262
      %v389 = vpop.f32.mrb[0].mxu0
      %v390 = vadd.f32 0.0, %v389
      %v391 = vpop.f32.mrb[0].mxu0
      %392 = vmatprep.mubr.f32.mxu0 0.0
      %393 = vmatmul.mubr.f32.gmra.mrb[0].mxu0 %v265
      %v394 = vpop.f32.mrb[0].mxu0
      %v395 = vadd.f32 0.0, %v394
      %v396 = vpop.f32.mrb[0].mxu0
      %397 = vmatprep.mubr.f32.mxu0 0.0
      %398 = vmatmul.mubr.f32.gmra.mrb[0].mxu0 %v268
      %v399 = vpop.f32.mrb[0].mxu0
      %v400 = vadd.f32 0.0, %v399
      %v401 = vpop.f32.mrb[0].mxu0
      %402 = vmatprep.mubr.f32.mxu0 0.0
      %403 = vmatmul.mubr.f32.gmra.mrb[0].mxu0 %v271
      %v404 = vpop.f32.mrb[0].mxu0
      %v405 = vadd.f32 0.0, %v404
      %v406 = vpop.f32.mrb[0].mxu0
      %407 = vmatprep.mubr.f32.mxu0 0.0
      %408 = vmatmul.mubr.f32.gmra.mrb[0].mxu0 %v274
      %v409 = vpop.f32.mrb[0].mxu0
      %v410 = vadd.f32 0.0, %v409
      %v411 = vpop.f32.mrb[0].mxu0
      %412 = vmatprep.mubr.f32.mxu0 0.0
      %413 = vmatmul.mubr.f32.gmra.mrb[0].mxu0 %v277
      %v414 = vpop.f32.mrb[0].mxu0
      %v415 = vadd.f32 0.0, %v414
      %v416 = vpop.f32.mrb[0].mxu0
      %417 = vmatprep.mubr.f32.mxu0 0.0
      %418 = vmatmul.mubr.f32.gmra.mrb[0].mxu0 %v280
      %v419 = vpop.f32.mrb[0].mxu0
      %v420 = vadd.f32 0.0, %v419
      %v421 = vpop.f32.mrb[0].mxu0
      %422 = vmatprep.mubr.f32.mxu0 0.0
      %423 = vmatmul.mubr.f32.gmra.mrb[0].mxu0 %v283
      %v424 = vpop.f32.mrb[0].mxu0
      %v425 = vadd.f32 0.0, %v424
      %v426 = vpop.f32.mrb[0].mxu0
      %427 = vmatprep.mubr.f32.mxu0 0.0
      %428 = vmatmul.mubr.f32.gmra.mrb[0].mxu0 %v286
      %v429 = vpop.f32.mrb[0].mxu0
      %v430 = vadd.f32 0.0, %v429
      %v431 = vpop.f32.mrb[0].mxu0
      %432 = vdwg.mxu0
      %v433 = vld [vmem:[%s2] sm:$0xff]
      %v434 = vld [vmem:[%s2 + $0x8] sm:$0xff]
      %v435 = vld [vmem:[%s2 + $0x10] sm:$0xff]
      %v436 = vld [vmem:[%s2 + $0x18] sm:$0xff]
      %vm437 = vcmask 261120
      %v439 = vsel %vm437, %v355, 0
      %v442 = vsel %vm437, %v360, 0
      %v445 = vsel %vm437, %v365, 0
      %v448 = vsel %vm437, %v370, 0
      %v451 = vsel %vm437, %v375, 0
      %v454 = vsel %vm437, %v380, 0
      %v457 = vsel %vm437, %v385, 0
      %v460 = vsel %vm437, %v390, 0
      %v463 = vsel %vm437, %v395, 0
      %v466 = vsel %vm437, %v400, 0
      %v469 = vsel %vm437, %v405, 0
      %v472 = vsel %vm437, %v410, 0
      %v475 = vsel %vm437, %v415, 0
      %v478 = vsel %vm437, %v420, 0
      %v481 = vsel %vm437, %v425, 0
      %v484 = vsel %vm437, %v430, 0
      %486 = vmatprep.subr.mxu0 0.0
      %487 = vmatpush1.msra.mxu0 %v433
      %488 = vmatprep.subr.mxu0 0.0
      %489 = vmatpush1.msra.mxu0 %v434
      %490 = vmatprep.subr.mxu0 0.0
      %491 = vmatpush1.msra.mxu0 %v435
      %492 = vmatprep.subr.mxu0 0.0
      %493 = vmatpush1.msra.mxu0 %v436
      %494 = vmatprep.subr.mxu0 0.0
      %495 = vmatpush1.msra.mxu0 0.0
      %496 = vmatprep.subr.mxu0 0.0
      %497 = vmatpush1.msra.mxu0 0.0
      %498 = vmatprep.subr.mxu0 0.0
      %499 = vmatpush1.msra.mxu0 0.0
      %500 = vmatprep.subr.mxu0 0.0
      %501 = vmatpush1.msra.mxu0 0.0
      %502 = vmatprep.subr.mxu0 0.0
      %503 = vmatpush1.msra.mxu0 0.0
      %504 = vmatprep.subr.mxu0 0.0
      %505 = vmatpush1.msra.mxu0 0.0
      %506 = vmatprep.subr.mxu0 0.0
      %507 = vmatpush1.msra.mxu0 0.0
      %508 = vmatprep.subr.mxu0 0.0
      %509 = vmatpush1.msra.mxu0 0.0
      %510 = vmatprep.subr.mxu0 0.0
      %511 = vmatpush1.msra.mxu0 0.0
      %512 = vmatprep.subr.mxu0 0.0
      %513 = vmatpush1.msra.mxu0 0.0
      %514 = vmatprep.subr.mxu0 0.0
      %515 = vmatpush1.msra.mxu0 0.0
      %516 = vmatprep.subr.mxu0 0.0
      %517 = vmatpush1.msra.mxu0 0.0
      %518 = vmatprep.subr.mxu0 0.0
      %519 = vmatpush1.msra.mxu0 0.0
      %520 = vmatprep.subr.mxu0 0.0
      %521 = vmatpush1.msra.mxu0 0.0
      %522 = vmatprep.subr.mxu0 0.0
      %523 = vmatpush1.msra.mxu0 0.0
      %524 = vmatprep.subr.mxu0 0.0
      %525 = vmatpush1.msra.mxu0 0.0
      %526 = vmatprep.subr.mxu0 0.0
      %527 = vmatpush1.msra.mxu0 0.0
      %528 = vmatprep.subr.mxu0 0.0
      %529 = vmatpush1.msra.mxu0 0.0
      %530 = vmatprep.subr.mxu0 0.0
      %531 = vmatpush1.msra.mxu0 0.0
      %532 = vmatprep.subr.mxu0 0.0
      %533 = vmatpush1.msra.mxu0 0.0
      %534 = vmatprep.subr.mxu0 0.0
      %535 = vmatpush1.msra.mxu0 0.0
      %536 = vmatprep.subr.mxu0 0.0
      %537 = vmatpush1.msra.mxu0 0.0
      %538 = vmatprep.subr.mxu0 0.0
      %539 = vmatpush1.msra.mxu0 0.0
      %540 = vmatprep.subr.mxu0 0.0
      %541 = vmatpush1.msra.mxu0 0.0
      %542 = vmatprep.subr.mxu0 0.0
      %543 = vmatpush1.msra.mxu0 0.0
      %544 = vmatprep.subr.mxu0 0.0
      %545 = vmatpush1.msra.mxu0 0.0
      %546 = vmatprep.subr.mxu0 0.0
      %547 = vmatpush1.msra.mxu0 0.0
      %548 = vmatprep.subr.mxu0 0.0
      %549 = vmatpush1.msra.mxu0 0.0
      %550 = vmatprep.mubr.f32.mxu0 0.0
      %551 = vmatmul.mubr.f32.gmra.mrb[0].mxu0 %v439
      %v552 = vpop.f32.mrb[0].mxu0
      %v553 = vadd.f32 0.0, %v552
      %v554 = vpop.f32.mrb[0].mxu0
      %555 = vmatprep.mubr.f32.mxu0 0.0
      %556 = vmatmul.mubr.f32.gmra.mrb[0].mxu0 %v442
      %v557 = vpop.f32.mrb[0].mxu0
      %v558 = vadd.f32 0.0, %v557
      %v559 = vpop.f32.mrb[0].mxu0
      %560 = vmatprep.mubr.f32.mxu0 0.0
      %561 = vmatmul.mubr.f32.gmra.mrb[0].mxu0 %v445
      %v562 = vpop.f32.mrb[0].mxu0
      %v563 = vadd.f32 0.0, %v562
      %v564 = vpop.f32.mrb[0].mxu0
      %565 = vmatprep.mubr.f32.mxu0 0.0
      %566 = vmatmul.mubr.f32.gmra.mrb[0].mxu0 %v448
      %v567 = vpop.f32.mrb[0].mxu0
      %v568 = vadd.f32 0.0, %v567
      %v569 = vpop.f32.mrb[0].mxu0
      %570 = vmatprep.mubr.f32.mxu0 0.0
      %571 = vmatmul.mubr.f32.gmra.mrb[0].mxu0 %v451
      %v572 = vpop.f32.mrb[0].mxu0
      %v573 = vadd.f32 0.0, %v572
      %v574 = vpop.f32.mrb[0].mxu0
      %575 = vmatprep.mubr.f32.mxu0 0.0
      %576 = vmatmul.mubr.f32.gmra.mrb[0].mxu0 %v454
      %v577 = vpop.f32.mrb[0].mxu0
      %v578 = vadd.f32 0.0, %v577
      %v579 = vpop.f32.mrb[0].mxu0
      %580 = vmatprep.mubr.f32.mxu0 0.0
      %581 = vmatmul.mubr.f32.gmra.mrb[0].mxu0 %v457
      %v582 = vpop.f32.mrb[0].mxu0
      %v583 = vadd.f32 0.0, %v582
      %v584 = vpop.f32.mrb[0].mxu0
      %585 = vmatprep.mubr.f32.mxu0 0.0
      %586 = vmatmul.mubr.f32.gmra.mrb[0].mxu0 %v460
      %v587 = vpop.f32.mrb[0].mxu0
      %v588 = vadd.f32 0.0, %v587
      %v589 = vpop.f32.mrb[0].mxu0
      %590 = vmatprep.mubr.f32.mxu0 0.0
      %591 = vmatmul.mubr.f32.gmra.mrb[0].mxu0 %v463
      %v592 = vpop.f32.mrb[0].mxu0
      %v593 = vadd.f32 0.0, %v592
      %v594 = vpop.f32.mrb[0].mxu0
      %595 = vmatprep.mubr.f32.mxu0 0.0
      %596 = vmatmul.mubr.f32.gmra.mrb[0].mxu0 %v466
      %v597 = vpop.f32.mrb[0].mxu0
      %v598 = vadd.f32 0.0, %v597
      %v599 = vpop.f32.mrb[0].mxu0
      %600 = vmatprep.mubr.f32.mxu0 0.0
      %601 = vmatmul.mubr.f32.gmra.mrb[0].mxu0 %v469
      %v602 = vpop.f32.mrb[0].mxu0
      %v603 = vadd.f32 0.0, %v602
      %v604 = vpop.f32.mrb[0].mxu0
      %605 = vmatprep.mubr.f32.mxu0 0.0
      %606 = vmatmul.mubr.f32.gmra.mrb[0].mxu0 %v472
      %v607 = vpop.f32.mrb[0].mxu0
      %v608 = vadd.f32 0.0, %v607
      %v609 = vpop.f32.mrb[0].mxu0
      %610 = vmatprep.mubr.f32.mxu0 0.0
      %611 = vmatmul.mubr.f32.gmra.mrb[0].mxu0 %v475
      %v612 = vpop.f32.mrb[0].mxu0
      %v613 = vadd.f32 0.0, %v612
      %v614 = vpop.f32.mrb[0].mxu0
      %615 = vmatprep.mubr.f32.mxu0 0.0
      %616 = vmatmul.mubr.f32.gmra.mrb[0].mxu0 %v478
      %v617 = vpop.f32.mrb[0].mxu0
      %v618 = vadd.f32 0.0, %v617
      %v619 = vpop.f32.mrb[0].mxu0
      %620 = vmatprep.mubr.f32.mxu0 0.0
      %621 = vmatmul.mubr.f32.gmra.mrb[0].mxu0 %v481
      %v622 = vpop.f32.mrb[0].mxu0
      %v623 = vadd.f32 0.0, %v622
      %v624 = vpop.f32.mrb[0].mxu0
      %625 = vmatprep.mubr.f32.mxu0 0.0
      %626 = vmatmul.mubr.f32.gmra.mrb[0].mxu0 %v484
      %v627 = vpop.f32.mrb[0].mxu0
      %v628 = vadd.f32 0.0, %v627
      %v629 = vpop.f32.mrb[0].mxu0
      %630 = vdwg.mxu0
      %vm631 = vcmp.gt.f32.partialorder %v553, 0.0
      %vm632 = vcmp.gt.f32.partialorder %v558, 0.0
      %vm633 = vcmp.gt.f32.partialorder %v563, 0.0
      %vm634 = vcmp.gt.f32.partialorder %v568, 0.0
      %vm635 = vcmp.gt.f32.partialorder %v573, 0.0
      %vm636 = vcmp.gt.f32.partialorder %v578, 0.0
      %vm637 = vcmp.gt.f32.partialorder %v583, 0.0
      %vm638 = vcmp.gt.f32.partialorder %v588, 0.0
      %vm639 = vcmp.gt.f32.partialorder %v593, 0.0
      %vm640 = vcmp.gt.f32.partialorder %v598, 0.0
      %vm641 = vcmp.gt.f32.partialorder %v603, 0.0
      %vm642 = vcmp.gt.f32.partialorder %v608, 0.0
      %vm643 = vcmp.gt.f32.partialorder %v613, 0.0
      %vm644 = vcmp.gt.f32.partialorder %v618, 0.0
      %vm645 = vcmp.gt.f32.partialorder %v623, 0.0
      %vm646 = vcmp.gt.f32.partialorder %v628, 0.0
      %v647 = vmul.f32 %v553, 0.1
      %v648 = vmul.f32 %v558, 0.1
      %v649 = vmul.f32 %v563, 0.1
      %v650 = vmul.f32 %v568, 0.1
      %v651 = vmul.f32 %v573, 0.1
      %v652 = vmul.f32 %v578, 0.1
      %v653 = vmul.f32 %v583, 0.1
      %v654 = vmul.f32 %v588, 0.1
      %v655 = vmul.f32 %v593, 0.1
      %v656 = vmul.f32 %v598, 0.1
      %v657 = vmul.f32 %v603, 0.1
      %v658 = vmul.f32 %v608, 0.1
      %v659 = vmul.f32 %v613, 0.1
      %v660 = vmul.f32 %v618, 0.1
      %v661 = vmul.f32 %v623, 0.1
      %v662 = vmul.f32 %v628, 0.1
      %v663 = vsel %vm631, %v553, %v647
      %v664 = vsel %vm632, %v558, %v648
      %v665 = vsel %vm633, %v563, %v649
      %v666 = vsel %vm634, %v568, %v650
      %v667 = vsel %vm635, %v573, %v651
      %v668 = vsel %vm636, %v578, %v652
      %v669 = vsel %vm637, %v583, %v653
      %v670 = vsel %vm638, %v588, %v654
      %v671 = vsel %vm639, %v593, %v655
      %v672 = vsel %vm640, %v598, %v656
      %v673 = vsel %vm641, %v603, %v657
      %v674 = vsel %vm642, %v608, %v658
      %v675 = vsel %vm643, %v613, %v659
      %v676 = vsel %vm644, %v618, %v660
      %v677 = vsel %vm645, %v623, %v661
      %v678 = vsel %vm646, %v628, %v662
      %v679 = vxor.u32 %v663, 2147483648
      %v680 = vxor.u32 %v664, 2147483648
      %v681 = vxor.u32 %v665, 2147483648
      %v682 = vxor.u32 %v666, 2147483648
      %v683 = vxor.u32 %v667, 2147483648
      %v684 = vxor.u32 %v668, 2147483648
      %v685 = vxor.u32 %v669, 2147483648
      %v686 = vxor.u32 %v670, 2147483648
      %v687 = vxor.u32 %v671, 2147483648
      %v688 = vxor.u32 %v672, 2147483648
      %v689 = vxor.u32 %v673, 2147483648
      %v690 = vxor.u32 %v674, 2147483648
      %v691 = vxor.u32 %v675, 2147483648
      %v692 = vxor.u32 %v676, 2147483648
      %v693 = vxor.u32 %v677, 2147483648
      %v694 = vxor.u32 %v678, 2147483648
      %v695 = vmul.f32 %v679, 1.442695
      %v696 = vpow.pop %v695
      %v697 = vmul.f32 %v680, 1.442695
      %v698 = vpow.pop %v697
      %v699 = vmul.f32 %v681, 1.442695
      %v700 = vpow.pop %v699
      %v701 = vmul.f32 %v682, 1.442695
      %v702 = vpow.pop %v701
      %v703 = vmul.f32 %v683, 1.442695
      %v704 = vpow.pop %v703
      %v705 = vmul.f32 %v684, 1.442695
      %v706 = vpow.pop %v705
      %v707 = vmul.f32 %v685, 1.442695
      %v708 = vpow.pop %v707
      %v709 = vmul.f32 %v686, 1.442695
      %v710 = vpow.pop %v709
      %v711 = vmul.f32 %v687, 1.442695
      %v712 = vpow.pop %v711
      %v713 = vmul.f32 %v688, 1.442695
      %v714 = vpow.pop %v713
      %v715 = vmul.f32 %v689, 1.442695
      %v716 = vpow.pop %v715
      %v717 = vmul.f32 %v690, 1.442695
      %v718 = vpow.pop %v717
      %v719 = vmul.f32 %v691, 1.442695
      %v720 = vpow.pop %v719
      %v721 = vmul.f32 %v692, 1.442695
      %v722 = vpow.pop %v721
      %v723 = vmul.f32 %v693, 1.442695
      %v724 = vpow.pop %v723
      %v725 = vmul.f32 %v694, 1.442695
      %v726 = vpow.pop %v725
      %v727 = vadd.f32 %v696, 1.0
      %v728 = vadd.f32 %v698, 1.0
      %v729 = vadd.f32 %v700, 1.0
      %v730 = vadd.f32 %v702, 1.0
      %v731 = vadd.f32 %v704, 1.0
      %v732 = vadd.f32 %v706, 1.0
      %v733 = vadd.f32 %v708, 1.0
      %v734 = vadd.f32 %v710, 1.0
      %v735 = vadd.f32 %v712, 1.0
      %v736 = vadd.f32 %v714, 1.0
      %v737 = vadd.f32 %v716, 1.0
      %v738 = vadd.f32 %v718, 1.0
      %v739 = vadd.f32 %v720, 1.0
      %v740 = vadd.f32 %v722, 1.0
      %v741 = vadd.f32 %v724, 1.0
      %v742 = vadd.f32 %v726, 1.0
      %v743 = vrcp.pop %v727
      %v744 = vmul.f32 1.0, %v743
      %v745 = vrcp.pop %v728
      %v746 = vmul.f32 1.0, %v745
      %v747 = vrcp.pop %v729
      %v748 = vmul.f32 1.0, %v747
      %v749 = vrcp.pop %v730
      %v750 = vmul.f32 1.0, %v749
      %v751 = vrcp.pop %v731
      %v752 = vmul.f32 1.0, %v751
      %v753 = vrcp.pop %v732
      %v754 = vmul.f32 1.0, %v753
      %v755 = vrcp.pop %v733
      %v756 = vmul.f32 1.0, %v755
      %v757 = vrcp.pop %v734
      %v758 = vmul.f32 1.0, %v757
      %v759 = vrcp.pop %v735
      %v760 = vmul.f32 1.0, %v759
      %v761 = vrcp.pop %v736
      %v762 = vmul.f32 1.0, %v761
      %v763 = vrcp.pop %v737
      %v764 = vmul.f32 1.0, %v763
      %v765 = vrcp.pop %v738
      %v766 = vmul.f32 1.0, %v765
      %v767 = vrcp.pop %v739
      %v768 = vmul.f32 1.0, %v767
      %v769 = vrcp.pop %v740
      %v770 = vmul.f32 1.0, %v769
      %v771 = vrcp.pop %v741
      %v772 = vmul.f32 1.0, %v771
      %v773 = vrcp.pop %v742
      %v774 = vmul.f32 1.0, %v773
      %vm775 = vcmask 15360
      %776 = vst.msk [vmem:[%s213] sm:$0xff] %vm775, %v744
      %777 = vst.msk [vmem:[%s213 + $0x8] sm:$0xff] %vm775, %v746
      %778 = vst.msk [vmem:[%s213 + $0x10] sm:$0xff] %vm775, %v748
      %779 = vst.msk [vmem:[%s213 + $0x18] sm:$0xff] %vm775, %v750
      %780 = vst.msk [vmem:[%s213 + $0x20] sm:$0xff] %vm775, %v752
      %781 = vst.msk [vmem:[%s213 + $0x28] sm:$0xff] %vm775, %v754
      %782 = vst.msk [vmem:[%s213 + $0x30] sm:$0xff] %vm775, %v756
      %783 = vst.msk [vmem:[%s213 + $0x38] sm:$0xff] %vm775, %v758
      %784 = vst.msk [vmem:[%s213 + $0x40] sm:$0xff] %vm775, %v760
      %785 = vst.msk [vmem:[%s213 + $0x48] sm:$0xff] %vm775, %v762
      %786 = vst.msk [vmem:[%s213 + $0x50] sm:$0xff] %vm775, %v764
      %787 = vst.msk [vmem:[%s213 + $0x58] sm:$0xff] %vm775, %v766
      %788 = vst.msk [vmem:[%s213 + $0x60] sm:$0xff] %vm775, %v768
      %789 = vst.msk [vmem:[%s213 + $0x68] sm:$0xff] %vm775, %v770
      %790 = vst.msk [vmem:[%s213 + $0x70] sm:$0xff] %vm775, %v772
      %791 = vst.msk [vmem:[%s213 + $0x78] sm:$0xff] %vm775, %v774
      %792 = vst.msk [vmem:[%s207] sm:$0xff] %vm437, %v355
      %793 = vst.msk [vmem:[%s207 + $0x8] sm:$0xff] %vm437, %v360
      %794 = vst.msk [vmem:[%s207 + $0x10] sm:$0xff] %vm437, %v365
      %795 = vst.msk [vmem:[%s207 + $0x18] sm:$0xff] %vm437, %v370
      %796 = vst.msk [vmem:[%s207 + $0x20] sm:$0xff] %vm437, %v375
      %797 = vst.msk [vmem:[%s207 + $0x28] sm:$0xff] %vm437, %v380
      %798 = vst.msk [vmem:[%s207 + $0x30] sm:$0xff] %vm437, %v385
      %799 = vst.msk [vmem:[%s207 + $0x38] sm:$0xff] %vm437, %v390
      %800 = vst.msk [vmem:[%s207 + $0x40] sm:$0xff] %vm437, %v395
      %801 = vst.msk [vmem:[%s207 + $0x48] sm:$0xff] %vm437, %v400
      %802 = vst.msk [vmem:[%s207 + $0x50] sm:$0xff] %vm437, %v405
      %803 = vst.msk [vmem:[%s207 + $0x58] sm:$0xff] %vm437, %v410
      %804 = vst.msk [vmem:[%s207 + $0x60] sm:$0xff] %vm437, %v415
      %805 = vst.msk [vmem:[%s207 + $0x68] sm:$0xff] %vm437, %v420
      %806 = vst.msk [vmem:[%s207 + $0x70] sm:$0xff] %vm437, %v425
      %807 = vst.msk [vmem:[%s207 + $0x78] sm:$0xff] %vm437, %v430
      %s808 = smul.u32 16, %s16
      %p809 = scmp.lt.s32.totalorder %s808, 31
      %s810 = scalar_select %p809, %s808, 31
      %s811 = smul.addr %s810, 8
      %s812 = scalar_lea.vmem %s3, %s811
      %s813 = smul.u32 16, %s16
      %p814 = scmp.lt.s32.totalorder %s813, 31
      %s815 = scalar_select %p814, %s813, 31
      %s816 = smul.addr %s815, 8
      %s817 = scalar_lea.vmem %s4, %s816
      // Predicated region
      $region33: #{tpu_custom_call.1} parent=31 // pred_check
        %p818 = pneg %p102
      $region34: #{tpu_custom_call.1} parent=31 // pred_check_branch
        %820 = sbr.rel (%p818) target = $region36
      $region35: #{tpu_custom_call.1} parent=31 // pred_region
        %s821 = smul.u32 16, %s16
      $region36: #{tpu_custom_call.1} parent=31 // pred_fallthru
        _
      // Predicated region
      $region37: #{tpu_custom_call.1} parent=31 // pred_check
        %p822 = pneg %p128
      $region38: #{tpu_custom_call.1} parent=31 // pred_check_branch
        %824 = sbr.rel (%p822) target = $region40
      $region39: #{tpu_custom_call.1} parent=31 // pred_region
        %s825 = smul.u32 16, %s16
      $region40: #{tpu_custom_call.1} parent=31 // pred_fallthru
        _
    $region32: #{tpu_custom_call.1} parent=5 // pred_fallthru
      _
    %p826 = scmp.le.s32.totalorder 2, %s11
    // Predicated region
    $region41: #{tpu_custom_call.1} parent=5 // pred_check
      %p827 = pneg %p826
    $region42: #{tpu_custom_call.1} parent=5 // pred_check_branch
      %829 = sbr.rel (%p827) target = $region44
    $region43: #{tpu_custom_call.1} parent=5 // pred_region
      %s830 = ssub.s32 %s11, 2
      // Predicated region
      $region45: #{tpu_custom_call.1} parent=43 // pred_check
        %p831 = pneg %p108
      $region46: #{tpu_custom_call.1} parent=43 // pred_check_branch
        %833 = sbr.rel (%p831) target = $region48
      $region47: #{tpu_custom_call.1} parent=43 // pred_region
        %s834 = smul.u32 16, %s17
        %p835 = scmp.lt.s32.totalorder %s834, 31
        %s836 = scalar_select %p835, %s834, 31
        %s837 = smul.addr %s836, 8
        %s838 = scalar_lea.vmem %s3, %s837
      $region48: #{tpu_custom_call.1} parent=43 // pred_fallthru
        _
      // Predicated region
      $region49: #{tpu_custom_call.1} parent=43 // pred_check
        %p839 = pneg %p134
      $region50: #{tpu_custom_call.1} parent=43 // pred_check_branch
        %841 = sbr.rel (%p839) target = $region52
      $region51: #{tpu_custom_call.1} parent=43 // pred_region
        %s842 = smul.u32 16, %s17
        %p843 = scmp.lt.s32.totalorder %s842, 31
        %s844 = scalar_select %p843, %s842, 31
        %s845 = smul.addr %s844, 8
        %s846 = scalar_lea.vmem %s4, %s845
      $region52: #{tpu_custom_call.1} parent=43 // pred_fallthru
        _
    $region44: #{tpu_custom_call.1} parent=5 // pred_fallthru
      _
  $region6: #{tpu_custom_call.1} parent=0 // loop_footer
    %s15 = sadd.s32 1, %s11
  $region7: #{tpu_custom_call.1} parent=0 // loop_footer_branch
    %10 = sbr.rel target = $region3
  $region8: #{tpu_custom_call.1} parent=0 // loop_exit
    _

</llo_original>
